<compile_context>
chip_gen: v6e
topology: v6e:2x2x1
jax: 0.10.0
libtpu: 0.0.40
codegen_flags: <defaults>
</compile_context>

<pallas_src>
import jax
import jax.numpy as jnp
from jax.experimental import pallas as pl
from jax.experimental.pallas import tpu as pltpu

_LANE = 128
_SUBLANE = 8


def _round_up(n, m):
    return ((n + m - 1) // m) * m


def _cdiv(a, b):
    return (a + b - 1) // b


def _plan_tiles(B, M, itemsize, budget, lane_dense):
    """Pick (TB, TM, n_m_tiles) so every pipeline buffer fits `budget`.

    Accounted VMEM (lane/sublane padded, double-buffered where pipelined):
      x   : 2 * TB * round_up(TM, 128) * itemsize
      w   : 2 * 8  * round_up(TM, 128) * 4
      out : 2 * TB * (8*4 if lane-dense row else 128*4)
      acc : TB * 128 * 4           (scratch, only when the M axis is tiled)
    """
    out_bytes_per_row = 2 * _SUBLANE * 4 if lane_dense else 2 * _LANE * 4

    def w_bytes(tm_pad):
        return 2 * _SUBLANE * tm_pad * 4

    def row_bytes(tm_pad, with_acc):
        return 2 * tm_pad * itemsize + out_bytes_per_row + (_LANE * 4 if with_acc else 0)

    # 1) Preferred: a single M tile (TM == M): weight resident, exact reduction.
    tm_pad = _round_up(M, _LANE)
    tb = (budget - w_bytes(tm_pad)) // row_bytes(tm_pad, with_acc=False)
    if tb >= _SUBLANE:
        tb = min((tb // _SUBLANE) * _SUBLANE, _round_up(B, _SUBLANE))
        return tb, M, 1

    # 2) Very wide M: tile the feature axis (multiple of 128), keep >=256 rows.
    tb_min = 256
    tm = (budget - tb_min * (out_bytes_per_row + _LANE * 4)) // (
        2 * tb_min * itemsize + 2 * _SUBLANE * 4)
    tm = max(_LANE, min((tm // _LANE) * _LANE, _round_up(M, _LANE)))
    tb = (budget - w_bytes(tm)) // row_bytes(tm, with_acc=True)
    tb = max(_SUBLANE, (tb // _SUBLANE) * _SUBLANE)
    tb = min(tb, _round_up(B, _SUBLANE))
    return tb, tm, _cdiv(M, tm)


def _balance_for_two_cores(B, tb):
    """Best-effort even batch-tile count so the 'parallel' axis splits evenly
    across v7x's 2 TensorCores (no-op on v5e/v6e single-core chips)."""
    nbt = _cdiv(B, tb)
    if nbt <= 1 or nbt % 2 == 0:
        return tb
    tb2 = _round_up(_cdiv(B, nbt + 1), _SUBLANE)
    if tb2 >= _SUBLANE and _cdiv(B, tb2) % 2 == 0:
        return tb2
    return tb


def _make_kernel(n_m_tiles, tm, m_total, lane_dense):
    multi_k = n_m_tiles > 1
    ragged = (n_m_tiles * tm) != m_total   # last M tile has padding lanes

    def kernel(x_ref, w_ref, b_ref, o_ref, *scratch):
        # x_ref: (TB, TM) VMEM, w_ref: (1, TM) VMEM, b_ref: (1,) SMEM
        x = x_ref[...].astype(jnp.float32)
        w = w_ref[...].astype(jnp.float32)          # broadcasts over the batch rows
        prod = x * w
        if ragged:
            # Mask padding lanes of the partial M tile AFTER the multiply so any
            # NaN/Inf garbage in uninitialized lanes is squashed to 0.
            lane = jax.lax.broadcasted_iota(jnp.int32, prod.shape, 1)
            prod = jnp.where(pl.program_id(1) * tm + lane < m_total, prod, 0.0)
        partial = jnp.sum(prod, axis=-1, keepdims=True)   # (TB, 1), exact f32

        def store(z):
            y = jax.nn.sigmoid(z + b_ref[0])               # EUP sigmoid
            # Lane-dense layout: one (TB,1)->(1,TB) XLU transpose per batch tile.
            o_ref[...] = (y.T if lane_dense else y).astype(o_ref.dtype)

        if not multi_k:
            store(partial)
            return

        acc_ref = scratch[0]
        k = pl.program_id(1)

        @pl.when(k == 0)
        def _init():
            acc_ref[...] = jnp.zeros_like(acc_ref)

        acc_ref[...] += partial

        @pl.when(k == pl.num_programs(1) - 1)
        def _finalize():
            store(acc_ref[...])

    return kernel


def _forward(x, weight, bias, budget, lane_dense):
    B, M = x.shape
    itemsize = jnp.dtype(x.dtype).itemsize
    tb, tm, n_mt = _plan_tiles(B, M, itemsize, budget, lane_dense)
    tb = _balance_for_two_cores(B, tb)
    n_bt = _cdiv(B, tb)

    kernel = _make_kernel(n_mt, tm, M, lane_dense)

    in_specs = [
        pl.BlockSpec((tb, tm), lambda i, k: (i, k)),    # x batch/feature tile
        pl.BlockSpec((1, tm), lambda i, k: (0, k)),     # weight chunk (re-used per batch tile)
        pl.BlockSpec(memory_space=pltpu.SMEM),          # bias scalar
    ]
    if lane_dense:
        out_shape = jax.ShapeDtypeStruct((n_bt, tb), jnp.float32)
        out_specs = pl.BlockSpec((1, tb), lambda i, k: (i, 0))
    else:
        out_shape = jax.ShapeDtypeStruct((B, 1), jnp.float32)
        out_specs = pl.BlockSpec((tb, 1), lambda i, k: (i, 0))

    scratch = (pltpu.VMEM((tb, 1), jnp.float32),) if n_mt > 1 else ()

    cost = pl.CostEstimate(
        flops=2 * B * M,
        transcendentals=B,
        bytes_accessed=itemsize * B * M + 4 * M * n_bt + 4 * B,
    )

    out = pl.pallas_call(
        kernel,
        out_shape=out_shape,
        grid_spec=pltpu.PrefetchScalarGridSpec(
            num_scalar_prefetch=0,
            grid=(n_bt, n_mt),              # batch tiles (parallel), M tiles (reduction, innermost)
            in_specs=in_specs,
            out_specs=out_specs,
            scratch_shapes=scratch,
        ),
        compiler_params=pltpu.CompilerParams(
            dimension_semantics=("parallel", "arbitrary"),
        ),
        cost_estimate=cost,
    )(x, weight, bias)

    if lane_dense:
        # (n_bt, tb) row-major == batch order; drop tail padding, restore (B, 1).
        return out.reshape(-1)[:B].reshape(B, 1)
    return out


def dtox_net_auxiliary(x, weight, bias, *, vmem_budget_bytes=12 * 1024 * 1024):
    """Forward pass of DToxNetAuxiliary: sigmoid(x @ weight.T + bias).

    Args:
      x:      (B, M_in) float32 or bfloat16 (accumulation is in f32)
      weight: (1, M_in) float32  (PyTorch nn.Linear weight, shape (out=1, in=M_in))
      bias:   (1,)      float32
    Returns:
      (B, 1) float32
    """
    try:
        return _forward(x, weight, bias, vmem_budget_bytes, lane_dense=True)
    except Exception:
        # TODO(synk): the lane-dense store needs a (TB,1)->(1,TB) in-kernel
        # transpose; fall back to width-1 output blocks if this Mosaic
        # toolchain cannot lower it.
        return _forward(x, weight, bias, vmem_budget_bytes, lane_dense=False)


if __name__ == "__main__":
    key = jax.random.PRNGKey(0)
    kx, kw, kb = jax.random.split(key, 3)

    B, M_in = 8, 32
    x = jax.random.normal(kx, (B, M_in), dtype=jnp.float32)

    # Deterministic parameter init mimicking nn.Linear's uniform(-1/sqrt(M), 1/sqrt(M)).
    bound = 1.0 / jnp.sqrt(jnp.float32(M_in))
    weight = jax.random.uniform(kw, (1, M_in), dtype=jnp.float32, minval=-bound, maxval=bound)
    bias = jax.random.uniform(kb, (1,), dtype=jnp.float32, minval=-bound, maxval=bound)

    out = dtox_net_auxiliary(x, weight, bias)
    out = jax.block_until_ready(out)

    ref = jax.nn.sigmoid(
        jnp.dot(x, weight.T, precision=jax.lax.Precision.HIGHEST) + bias)
    assert out.shape == (B, 1)
    assert jnp.allclose(out, ref, atol=1e-5, rtol=1e-5), "mismatch vs reference"

    print("KERNEL_OK")
</pallas_src>

<mosaic_0001>
module attributes {stable_mosaic.version = 11 : i64} {
  func.func @kernel(%arg0: i32, %arg1: i32, %arg2: memref<8x32xf32, #tpu.memory_space<vmem>>, %arg3: memref<1x32xf32, #tpu.memory_space<vmem>>, %arg4: memref<1xf32, #tpu.memory_space<smem>>, %arg5: memref<1x8xf32, #tpu.memory_space<vmem>>) attributes {dimension_semantics = [#tpu.dimension_semantics<parallel>, #tpu.dimension_semantics<arbitrary>], iteration_bounds = array<i64: 1, 1>, scalar_prefetch = 0 : i64, scratch_operands = 0 : i64, tpu.core_type = #tpu.core_type<tc>, window_params = [{transform_indices = @transform_0, window_bounds = array<i64: 8, 32>}, {transform_indices = @transform_1, window_bounds = array<i64: 1, 32>}, {transform_indices = @transform_2, window_bounds = array<i64: 1>}, {transform_indices = @transform_3, window_bounds = array<i64: 1, 8>}]} {
    %c0 = arith.constant 0 : index
    %c0_0 = arith.constant 0 : index
    %0 = vector.load %arg2[%c0, %c0_0] : memref<8x32xf32, #tpu.memory_space<vmem>>, vector<8x32xf32>
    %c0_1 = arith.constant 0 : index
    %c0_2 = arith.constant 0 : index
    %1 = vector.load %arg3[%c0_1, %c0_2] : memref<1x32xf32, #tpu.memory_space<vmem>>, vector<1x32xf32>
    %2 = vector.broadcast %1 : vector<1x32xf32> to vector<8x32xf32>
    %3 = arith.mulf %0, %2 : vector<8x32xf32>
    %cst = arith.constant dense<0.000000e+00> : vector<8xf32>
    %4 = vector.multi_reduction <add>, %3, %cst [1] : vector<8x32xf32> to vector<8xf32>
    %5 = vector.shape_cast %4 : vector<8xf32> to vector<8x1xf32>
    %c0_3 = arith.constant 0 : index
    %6 = memref.load %arg4[%c0_3] : memref<1xf32, #tpu.memory_space<smem>>
    %7 = vector.broadcast %6 : f32 to vector<8x1xf32>
    %8 = arith.addf %5, %7 : vector<8x1xf32>
    %9 = arith.negf %8 : vector<8x1xf32>
    %10 = math.exp %9 : vector<8x1xf32>
    %cst_4 = arith.constant 1.000000e+00 : f32
    %11 = vector.broadcast %cst_4 : f32 to vector<8x1xf32>
    %12 = arith.addf %11, %10 : vector<8x1xf32>
    %13 = arith.divf %11, %12 : vector<8x1xf32>
    %14 = tpu.transpose %13, [1, 0] : vector<8x1xf32> -> vector<1x8xf32>
    %c0_5 = arith.constant 0 : index
    %c0_6 = arith.constant 0 : index
    %15 = vector.load %arg5[%c0_5, %c0_6] : memref<1x8xf32, #tpu.memory_space<vmem>>, vector<1x8xf32>
    tpu.vector_store %arg5[%c0_5, %c0_6], %14 {strides = array<i32>} : memref<1x8xf32, #tpu.memory_space<vmem>>, vector<1x8xf32>,
    return
  }
  func.func @transform_0(%arg0: i32, %arg1: i32) -> (i32, i32) {
    %c0_i32 = arith.constant 0 : i32
    return %arg0, %arg1 : i32, i32
  }
  func.func @transform_1(%arg0: i32, %arg1: i32) -> (i32, i32) {
    %c0_i32 = arith.constant 0 : i32
    %c0_i32_0 = arith.constant 0 : i32
    return %c0_i32, %arg1 : i32, i32
  }
  func.func @transform_2(%arg0: i32, %arg1: i32) -> i32 {
    %c0_i32 = arith.constant 0 : i32
    %c0_i32_0 = arith.constant 0 : i32
    return %c0_i32 : i32
  }
  func.func @transform_3(%arg0: i32, %arg1: i32) -> (i32, i32) {
    %c0_i32 = arith.constant 0 : i32
    %c0_i32_0 = arith.constant 0 : i32
    return %arg0, %c0_i32 : i32, i32
  }
}

module attributes {stable_mosaic.version = 11 : i64} {
  func.func @kernel(%arg0: i32, %arg1: i32, %arg2: memref<8x32xf32, #tpu.memory_space<vmem>>, %arg3: memref<1x32xf32, #tpu.memory_space<vmem>>, %arg4: memref<1xf32, #tpu.memory_space<smem>>, %arg5: memref<8x1xf32, #tpu.memory_space<vmem>>) attributes {dimension_semantics = [#tpu.dimension_semantics<parallel>, #tpu.dimension_semantics<arbitrary>], iteration_bounds = array<i64: 1, 1>, scalar_prefetch = 0 : i64, scratch_operands = 0 : i64, tpu.core_type = #tpu.core_type<tc>, window_params = [{transform_indices = @transform_0, window_bounds = array<i64: 8, 32>}, {transform_indices = @transform_1, window_bounds = array<i64: 1, 32>}, {transform_indices = @transform_2, window_bounds = array<i64: 1>}, {transform_indices = @transform_3, window_bounds = array<i64: 8, 1>}]} {
    %c0 = arith.constant 0 : index
    %c0_0 = arith.constant 0 : index
    %0 = vector.load %arg2[%c0, %c0_0] : memref<8x32xf32, #tpu.memory_space<vmem>>, vector<8x32xf32>
    %c0_1 = arith.constant 0 : index
    %c0_2 = arith.constant 0 : index
    %1 = vector.load %arg3[%c0_1, %c0_2] : memref<1x32xf32, #tpu.memory_space<vmem>>, vector<1x32xf32>
    %2 = vector.broadcast %1 : vector<1x32xf32> to vector<8x32xf32>
    %3 = arith.mulf %0, %2 : vector<8x32xf32>
    %cst = arith.constant dense<0.000000e+00> : vector<8xf32>
    %4 = vector.multi_reduction <add>, %3, %cst [1] : vector<8x32xf32> to vector<8xf32>
    %5 = vector.shape_cast %4 : vector<8xf32> to vector<8x1xf32>
    %c0_3 = arith.constant 0 : index
    %6 = memref.load %arg4[%c0_3] : memref<1xf32, #tpu.memory_space<smem>>
    %7 = vector.broadcast %6 : f32 to vector<8x1xf32>
    %8 = arith.addf %5, %7 : vector<8x1xf32>
    %9 = arith.negf %8 : vector<8x1xf32>
    %10 = math.exp %9 : vector<8x1xf32>
    %cst_4 = arith.constant 1.000000e+00 : f32
    %11 = vector.broadcast %cst_4 : f32 to vector<8x1xf32>
    %12 = arith.addf %11, %10 : vector<8x1xf32>
    %13 = arith.divf %11, %12 : vector<8x1xf32>
    %c0_5 = arith.constant 0 : index
    %c0_6 = arith.constant 0 : index
    %14 = vector.load %arg5[%c0_5, %c0_6] : memref<8x1xf32, #tpu.memory_space<vmem>>, vector<8x1xf32>
    tpu.vector_store %arg5[%c0_5, %c0_6], %13 {strides = array<i32>} : memref<8x1xf32, #tpu.memory_space<vmem>>, vector<8x1xf32>,
    return
  }
  func.func @transform_0(%arg0: i32, %arg1: i32) -> (i32, i32) {
    %c0_i32 = arith.constant 0 : i32
    return %arg0, %arg1 : i32, i32
  }
  func.func @transform_1(%arg0: i32, %arg1: i32) -> (i32, i32) {
    %c0_i32 = arith.constant 0 : i32
    %c0_i32_0 = arith.constant 0 : i32
    return %c0_i32, %arg1 : i32, i32
  }
  func.func @transform_2(%arg0: i32, %arg1: i32) -> i32 {
    %c0_i32 = arith.constant 0 : i32
    %c0_i32_0 = arith.constant 0 : i32
    return %c0_i32 : i32
  }
  func.func @transform_3(%arg0: i32, %arg1: i32) -> (i32, i32) {
    %c0_i32 = arith.constant 0 : i32
    %c0_i32_0 = arith.constant 0 : i32
    return %arg0, %c0_i32 : i32, i32
  }
}

</mosaic_0001>

<llo_original>
// kernel: tpu_custom_call.1
$region0: #{tpu_custom_call.1}
  #allocation0 [shape = 'u32[]', space=smem, size = 0x4, offset = 0x4, fixed_abs, tag = 'smem constant byte address 0x4 - core index']
  #allocation1 [shape = 'u32[144,128]{1,0:T(1,128)}', space=vmem, size = 0x12000, scoped, tag = 'internal scratch']
  #allocation2 [shape = 'f32[1]{0:T(128)S(6)}', space=smem, size = 0x200, scoped, tag = 'scoped memory for tpu_custom_call.1']
  %s0 = inlined_call_operand.hbm [shape: f32[8,32], index: 0, kind: input, shape index: {}]
  %s1 = inlined_call_operand.vmem [shape: f32[1,32], index: 1, kind: input, shape index: {}]
  %s2 = inlined_call_operand.<no memory space> [shape: f32[1], index: 2, kind: input, shape index: {}]
  %s3 = inlined_call_operand.hbm [shape: f32[1,8], index: 3, kind: output, shape index: {}]
  %s4 = sld [smem:[#allocation0]]
  $region26: #{tpu_custom_call.1} parent=0
    _
  %s6 = ssub.s32 1, %s4
  %s7 = scalar_select 0, %s6, %s4
  %8 = sst [smem:[#allocation2]] %s2
  $region1: #{tpu_custom_call.1} parent=0
    #allocation3 [shape = 'u8[4096]{0}', space=vmem, size = 0x1000, scoped, tag = 'input window, operand 0, single buffered']
    #allocation4 [shape = 's32[1]{0}', space=sflag, size = 0x4, scoped, tag = 'scoped memory for tpu_custom_call.1']
    #allocation5 [shape = 's32[1]{0}', space=sflag, size = 0x4, scoped, tag = 'scoped memory for tpu_custom_call.1']
    #allocation6 [shape = 'u8[512]{0}', space=vmem, size = 0x400, scoped, tag = 'output window, operand 0, single buffered']
    %9 = vsyncpa [#allocation4], 0
    %10 = vsyncpa [#allocation5], 0
    // Predicated region
    $region2: #{tpu_custom_call.1} parent=1 // pred_check
      _
    $region3: #{tpu_custom_call.1} parent=1 // pred_check_branch
      %12 = sbr.rel (0) target = $region5
    $region4: #{tpu_custom_call.1} parent=1 // pred_region
      %s14 = ssub.s32 128, 128
      %15 = vsyncadd [#allocation4], %s14
      %s17 = sshll.u32 [#allocation3], 4
      %s18 = int_to_ptr.vmem [resolvable:$true] %s17
      %20 = dma.hbm_to_vmem [thread:$0]  %s0, 128, %s18, [#allocation4]
    $region5: #{tpu_custom_call.1} parent=1 // pred_fallthru
      _
    // Predicated region
    $region6: #{tpu_custom_call.1} parent=1 // pred_check
      _
    $region7: #{tpu_custom_call.1} parent=1 // pred_check_branch
      %22 = sbr.rel (0) target = $region9
    $region8: #{tpu_custom_call.1} parent=1 // pred_region
      _
    $region9: #{tpu_custom_call.1} parent=1 // pred_fallthru
      _
    // Predicated region
    $region10: #{tpu_custom_call.1} parent=1 // pred_check
      _
    $region11: #{tpu_custom_call.1} parent=1 // pred_check_branch
      %24 = sbr.rel (0) target = $region13
    $region12: #{tpu_custom_call.1} parent=1 // pred_region
      _
    $region13: #{tpu_custom_call.1} parent=1 // pred_fallthru
      _
    // Predicated region
    $region14: #{tpu_custom_call.1} parent=1 // pred_check
      _
    $region15: #{tpu_custom_call.1} parent=1 // pred_check_branch
      %26 = sbr.rel (0) target = $region17
    $region16: #{tpu_custom_call.1} parent=1 // pred_region
      %27 = dma.done [#allocation4], 128
    $region17: #{tpu_custom_call.1} parent=1 // pred_fallthru
      _
    %v28 = vld [vmem:[#allocation3] sm:$0xff]
    %v29 = vld [vmem:[%s1] sm:$0x1]
    %v31 = vlaneseq
    %v32 = vshrl.u32 %v31, 7
    %v33 = vsub.s32 0, %v32
    %v34 = vrot.slane %v29, %v33
    %v36 = vmul.f32 %v28, %v34
    %vm37 = vcmask 261120
    %v38 = vsel %vm37, %v36, 0.0
    %39 = vadd.xlane.f32.xlu0 %v38
    %v40 = vpop.xlane.xlu0 %39
    %s41 = sld [smem:[#allocation2]]
    %v42 = vstv %s41
    %v43 = vadd.f32 %v40, %v42
    %v44 = vxor.u32 %v43, 2147483648
    %v45 = vmul.f32 %v44, 1.442695
    %v46 = vpow.pop %v45
    %v47 = vadd.f32 %v46, 1.0
    %v48 = vrcp.pop %v47
    %v49 = vmul.f32 1.0, %v48
    %50 = vxpose.xlu0.b32.start [1/16] %v49, 128
    %51 = vxpose.xlu0.b32.cont [2/16] 0.0, 128
    %52 = vxpose.xlu0.b32.cont [3/16] 0.0, 128
    %53 = vxpose.xlu0.b32.cont [4/16] 0.0, 128
    %54 = vxpose.xlu0.b32.cont [5/16] 0.0, 128
    %55 = vxpose.xlu0.b32.cont [6/16] 0.0, 128
    %56 = vxpose.xlu0.b32.cont [7/16] 0.0, 128
    %57 = vxpose.xlu0.b32.cont [8/16] 0.0, 128
    %58 = vxpose.xlu0.b32.cont [9/16] 0.0, 128
    %59 = vxpose.xlu0.b32.cont [10/16] 0.0, 128
    %60 = vxpose.xlu0.b32.cont [11/16] 0.0, 128
    %61 = vxpose.xlu0.b32.cont [12/16] 0.0, 128
    %62 = vxpose.xlu0.b32.cont [13/16] 0.0, 128
    %63 = vxpose.xlu0.b32.cont [14/16] 0.0, 128
    %64 = vxpose.xlu0.b32.cont [15/16] 0.0, 128
    %65 = vxpose.xlu0.b32.end [16/16] 0.0, 128
    %v66 = vpop.trf.xlu0
    %v67 = vpop.trf.xlu0
    %v68 = vpop.trf.xlu0
    %v69 = vpop.trf.xlu0
    %v70 = vpop.trf.xlu0
    %v71 = vpop.trf.xlu0
    %v72 = vpop.trf.xlu0
    %v73 = vpop.trf.xlu0
    %v74 = vpop.trf.xlu0
    %v75 = vpop.trf.xlu0
    %v76 = vpop.trf.xlu0
    %v77 = vpop.trf.xlu0
    %v78 = vpop.trf.xlu0
    %v79 = vpop.trf.xlu0
    %v80 = vpop.trf.xlu0
    %v81 = vpop.trf.xlu0
    %vm82 = vcmask 57344
    %83 = vst.msk [vmem:[#allocation6] sm:$0x1] %vm82, %v66
    // Predicated region
    $region18: #{tpu_custom_call.1} parent=1 // pred_check
      _
    $region19: #{tpu_custom_call.1} parent=1 // pred_check_branch
      %85 = sbr.rel (0) target = $region21
    $region20: #{tpu_custom_call.1} parent=1 // pred_region
      %s87 = ssub.s32 16, 16
      %88 = vsyncadd [#allocation5], %s87
      %s90 = sshll.u32 [#allocation6], 4
      %s91 = int_to_ptr.vmem [resolvable:$true] %s90
      %93 = dma.vmem_to_hbm [thread:$0]  %s91, 16, %s3, [#allocation5]
    $region21: #{tpu_custom_call.1} parent=1 // pred_fallthru
      _
    // Predicated region
    $region22: #{tpu_custom_call.1} parent=1 // pred_check
      _
    $region23: #{tpu_custom_call.1} parent=1 // pred_check_branch
      %95 = sbr.rel (0) target = $region25
    $region24: #{tpu_custom_call.1} parent=1 // pred_region
      %96 = dma.done [#allocation5], 16
    $region25: #{tpu_custom_call.1} parent=1 // pred_fallthru
      _
    %97 = vsyncpa [#allocation4], 1
    %98 = vsyncpa [#allocation5], 1

// kernel: tpu_custom_call.1
$region0: #{tpu_custom_call.1}
  #allocation0 [shape = 'u32[]', space=smem, size = 0x4, offset = 0x4, fixed_abs, tag = 'smem constant byte address 0x4 - core index']
  #allocation1 [shape = 'u32[144,128]{1,0:T(1,128)}', space=vmem, size = 0x12000, scoped, tag = 'internal scratch']
  #allocation2 [shape = 'f32[1]{0:T(128)S(6)}', space=smem, size = 0x200, scoped, tag = 'scoped memory for tpu_custom_call.1']
  %s0 = inlined_call_operand.hbm [shape: f32[8,32], index: 0, kind: input, shape index: {}]
  %s1 = inlined_call_operand.vmem [shape: f32[1,32], index: 1, kind: input, shape index: {}]
  %s2 = inlined_call_operand.<no memory space> [shape: f32[1], index: 2, kind: input, shape index: {}]
  %s3 = inlined_call_operand.vmem [shape: f32[8,1], index: 3, kind: output, shape index: {}]
  %s4 = sld [smem:[#allocation0]]
  $region26: #{tpu_custom_call.1} parent=0
    _
  %s6 = ssub.s32 1, %s4
  %s7 = scalar_select 0, %s6, %s4
  %8 = sst [smem:[#allocation2]] %s2
  $region1: #{tpu_custom_call.1} parent=0
    #allocation3 [shape = 'u8[4096]{0}', space=vmem, size = 0x1000, scoped, tag = 'input window, operand 0, single buffered']
    #allocation4 [shape = 's32[1]{0}', space=sflag, size = 0x4, scoped, tag = 'scoped memory for tpu_custom_call.1']
    %9 = vsyncpa [#allocation4], 0
    // Predicated region
    $region2: #{tpu_custom_call.1} parent=1 // pred_check
      _
    $region3: #{tpu_custom_call.1} parent=1 // pred_check_branch
      %11 = sbr.rel (0) target = $region5
    $region4: #{tpu_custom_call.1} parent=1 // pred_region
      %s13 = ssub.s32 128, 128
      %14 = vsyncadd [#allocation4], %s13
      %s16 = sshll.u32 [#allocation3], 4
      %s17 = int_to_ptr.vmem [resolvable:$true] %s16
      %19 = dma.hbm_to_vmem [thread:$0]  %s0, 128, %s17, [#allocation4]
    $region5: #{tpu_custom_call.1} parent=1 // pred_fallthru
      _
    // Predicated region
    $region6: #{tpu_custom_call.1} parent=1 // pred_check
      _
    $region7: #{tpu_custom_call.1} parent=1 // pred_check_branch
      %21 = sbr.rel (0) target = $region9
    $region8: #{tpu_custom_call.1} parent=1 // pred_region
      _
    $region9: #{tpu_custom_call.1} parent=1 // pred_fallthru
      _
    // Predicated region
    $region10: #{tpu_custom_call.1} parent=1 // pred_check
      _
    $region11: #{tpu_custom_call.1} parent=1 // pred_check_branch
      %23 = sbr.rel (0) target = $region13
    $region12: #{tpu_custom_call.1} parent=1 // pred_region
      _
    $region13: #{tpu_custom_call.1} parent=1 // pred_fallthru
      _
    // Predicated region
    $region14: #{tpu_custom_call.1} parent=1 // pred_check
      _
    $region15: #{tpu_custom_call.1} parent=1 // pred_check_branch
      %25 = sbr.rel (0) target = $region17
    $region16: #{tpu_custom_call.1} parent=1 // pred_region
      %26 = dma.done [#allocation4], 128
    $region17: #{tpu_custom_call.1} parent=1 // pred_fallthru
      _
    %v27 = vld [vmem:[#allocation3] sm:$0xff]
    %v28 = vld [vmem:[%s1] sm:$0x1]
    %v30 = vlaneseq
    %v31 = vshrl.u32 %v30, 7
    %v32 = vsub.s32 0, %v31
    %v33 = vrot.slane %v28, %v32
    %v35 = vmul.f32 %v27, %v33
    %vm36 = vcmask 261120
    %v37 = vsel %vm36, %v35, 0.0
    %38 = vadd.xlane.f32.xlu0 %v37
    %v39 = vpop.xlane.xlu0 %38
    %s40 = sld [smem:[#allocation2]]
    %v41 = vstv %s40
    %v42 = vadd.f32 %v39, %v41
    %v43 = vxor.u32 %v42, 2147483648
    %v44 = vmul.f32 %v43, 1.442695
    %v45 = vpow.pop %v44
    %v46 = vadd.f32 %v45, 1.0
    %v47 = vrcp.pop %v46
    %v48 = vmul.f32 1.0, %v47
    %vm49 = vcmask 7168
    %50 = vst.msk [vmem:[%s3] sm:$0xff] %vm49, %v48
    // Predicated region
    $region18: #{tpu_custom_call.1} parent=1 // pred_check
      _
    $region19: #{tpu_custom_call.1} parent=1 // pred_check_branch
      %52 = sbr.rel (0) target = $region21
    $region20: #{tpu_custom_call.1} parent=1 // pred_region
      _
    $region21: #{tpu_custom_call.1} parent=1 // pred_fallthru
      _
    // Predicated region
    $region22: #{tpu_custom_call.1} parent=1 // pred_check
      _
    $region23: #{tpu_custom_call.1} parent=1 // pred_check_branch
      %54 = sbr.rel (0) target = $region25
    $region24: #{tpu_custom_call.1} parent=1 // pred_region
      _
    $region25: #{tpu_custom_call.1} parent=1 // pred_fallthru
      _
    %55 = vsyncpa [#allocation4], 1

</llo_original>
